<compile_context>
chip_gen: v7x
topology: tpu7x:2x2x1
jax: 0.10.0
libtpu: 0.0.40
codegen_flags: <defaults>
</compile_context>

<pallas_src>
import jax
import jax.numpy as jnp
from jax.experimental import pallas as pl
from jax.experimental.pallas import tpu as pltpu


# ---------------------------------------------------------------------------
# Fused Pallas kernel: pool + MLP + sigmoid gate + (w * lateral + top)
# ---------------------------------------------------------------------------
def _afa_kernel(lat_ref, top_ref, w1a_ref, w1b_ref, w2_ref, o_ref):
    # lat/top tiles: (1, C, HW) -> (C, HW); channels on sublanes, spatial on lanes.
    lat = lat_ref[0]
    top = top_ref[0]

    # Global average pool (AdaptiveAvgPool2d(1)) over the flattened spatial lanes.
    p_lat = jnp.mean(lat, axis=1, keepdims=True)          # (C, 1)
    p_top = jnp.mean(top, axis=1, keepdims=True)          # (C, 1)

    # conv1 (1x1, no bias) on cat([lateral, top]):
    #   h[m] = sum_c W1[m, c] * p_lat[c] + sum_c W1[m, C + c] * p_top[c]
    # w1a/w1b are the two C-slices of W1, transposed to (C, M).
    h = jnp.sum(w1a_ref[...] * p_lat + w1b_ref[...] * p_top,
                axis=0, keepdims=True)                     # (1, M)
    h = jnp.maximum(h, 0.0)                                # ReLU

    # conv2 (1x1, no bias): g[c] = sum_m W2[c, m] * h[m]
    g = jnp.sum(w2_ref[...] * h, axis=1, keepdims=True)    # (C, 1)
    g = 1.0 / (1.0 + jnp.exp(-g))                          # Sigmoid

    # Gated fusion, broadcast per-channel gate over the spatial lanes.
    o_ref[0] = (g * lat + top).astype(o_ref.dtype)


# ---------------------------------------------------------------------------
# Wrapper
# ---------------------------------------------------------------------------
def afa_forward(lateral_nchw, top_nchw, w1, w2):
    """AFA_block forward.

    lateral_nchw, top_nchw : (N, C, H, W) float32
    w1 : (C//8, 2C, 1, 1)  conv1 weight (no bias)
    w2 : (C, C//8, 1, 1)   conv2 weight (no bias)
    returns (N, C, H, W) float32
    """
    n, c, hh, ww = lateral_nchw.shape
    m = w1.shape[0]
    hw = hh * ww

    # Free reshapes only (NCHW is already contiguous in (N, C, H*W)).
    lat = lateral_nchw.reshape(n, c, hw).astype(jnp.float32)
    top = top_nchw.reshape(n, c, hw).astype(jnp.float32)

    w1m = w1.reshape(m, 2 * c).astype(jnp.float32)
    w1a = jnp.transpose(w1m[:, :c])                        # (C, M)  lateral half
    w1b = jnp.transpose(w1m[:, c:])                        # (C, M)  top half
    w2m = w2.reshape(c, m).astype(jnp.float32)             # (C, M)

    out = pl.pallas_call(
        _afa_kernel,
        out_shape=jax.ShapeDtypeStruct((n, c, hw), jnp.float32),
        grid=(n,),
        in_specs=[
            pl.BlockSpec((1, c, hw), lambda i: (i, 0, 0)),   # lateral
            pl.BlockSpec((1, c, hw), lambda i: (i, 0, 0)),   # top
            pl.BlockSpec((c, m), lambda i: (0, 0)),          # W1 (lateral slice)^T
            pl.BlockSpec((c, m), lambda i: (0, 0)),          # W1 (top slice)^T
            pl.BlockSpec((c, m), lambda i: (0, 0)),          # W2
        ],
        out_specs=pl.BlockSpec((1, c, hw), lambda i: (i, 0, 0)),
        compiler_params=pltpu.CompilerParams(
            dimension_semantics=("parallel",)),
    )(lat, top, w1a, w1b, w2m)

    return out.reshape(n, c, hh, ww)


# ---------------------------------------------------------------------------
# Pure-JAX reference (for correctness check)
# ---------------------------------------------------------------------------
def reference_afa(lateral, top, w1, w2):
    n, c, hh, ww = lateral.shape
    m = w1.shape[0]
    cat = jnp.concatenate([lateral, top], axis=1)           # (N, 2C, H, W)
    pooled = jnp.mean(cat, axis=(2, 3))                     # (N, 2C)
    h = jax.nn.relu(pooled @ w1.reshape(m, 2 * c).T)        # (N, M)
    g = jax.nn.sigmoid(h @ w2.reshape(c, m).T)              # (N, C)
    return g[:, :, None, None] * lateral + top


if __name__ == "__main__":
    key = jax.random.PRNGKey(0)
    k1, k2, k3, k4 = jax.random.split(key, 4)

    # Small shapes consistent with AFA_block(dim): dim must be a multiple of 8.
    batch, dim, H, W = 2, 128, 16, 16
    mid = dim // 8                                          # dim_mid
    lateral = jax.random.normal(k1, (batch, dim, H, W), jnp.float32)
    top = jax.random.normal(k2, (batch, dim, H, W), jnp.float32)
    w1 = 0.05 * jax.random.normal(k3, (mid, 2 * dim, 1, 1), jnp.float32)
    w2 = 0.05 * jax.random.normal(k4, (dim, mid, 1, 1), jnp.float32)

    out = jax.block_until_ready(afa_forward(lateral, top, w1, w2))
    ref = jax.block_until_ready(reference_afa(lateral, top, w1, w2))

    assert out.shape == ref.shape, (out.shape, ref.shape)
    err = float(jnp.max(jnp.abs(out - ref)))
    assert err < 1e-3, f"max abs error {err}"
    print("KERNEL_OK")
</pallas_src>

<mosaic_0001>
module attributes {stable_mosaic.version = 11 : i64} {
  func.func @_afa_kernel(%arg0: i32, %arg1: memref<1x128x256xf32, #tpu.memory_space<vmem>>, %arg2: memref<1x128x256xf32, #tpu.memory_space<vmem>>, %arg3: memref<128x16xf32, #tpu.memory_space<vmem>>, %arg4: memref<128x16xf32, #tpu.memory_space<vmem>>, %arg5: memref<128x16xf32, #tpu.memory_space<vmem>>, %arg6: memref<1x128x256xf32, #tpu.memory_space<vmem>>) attributes {dimension_semantics = [#tpu.dimension_semantics<parallel>], iteration_bounds = array<i64: 2>, scalar_prefetch = 0 : i64, scratch_operands = 0 : i64, tpu.core_type = #tpu.core_type<tc>, window_params = [{transform_indices = @transform_0, window_bounds = array<i64: 1, 128, 256>}, {transform_indices = @transform_1, window_bounds = array<i64: 1, 128, 256>}, {pipeline_mode = #tpu.pipeline_mode<synchronous>, transform_indices = @transform_2, window_bounds = array<i64: 128, 16>}, {pipeline_mode = #tpu.pipeline_mode<synchronous>, transform_indices = @transform_3, window_bounds = array<i64: 128, 16>}, {pipeline_mode = #tpu.pipeline_mode<synchronous>, transform_indices = @transform_4, window_bounds = array<i64: 128, 16>}, {transform_indices = @transform_5, window_bounds = array<i64: 1, 128, 256>}]} {
    %c0 = arith.constant 0 : index
    %c0_0 = arith.constant 0 : index
    %c0_1 = arith.constant 0 : index
    %0 = vector.load %arg1[%c0, %c0_0, %c0_1] : memref<1x128x256xf32, #tpu.memory_space<vmem>>, vector<1x128x256xf32>
    %1 = vector.shape_cast %0 : vector<1x128x256xf32> to vector<128x256xf32>
    %c0_2 = arith.constant 0 : index
    %c0_3 = arith.constant 0 : index
    %c0_4 = arith.constant 0 : index
    %2 = vector.load %arg2[%c0_2, %c0_3, %c0_4] : memref<1x128x256xf32, #tpu.memory_space<vmem>>, vector<1x128x256xf32>
    %3 = vector.shape_cast %2 : vector<1x128x256xf32> to vector<128x256xf32>
    %cst = arith.constant dense<0.000000e+00> : vector<128xf32>
    %4 = vector.multi_reduction <add>, %1, %cst [1] : vector<128x256xf32> to vector<128xf32>
    %5 = vector.shape_cast %4 : vector<128xf32> to vector<128x1xf32>
    %cst_5 = arith.constant 2.560000e+02 : f32
    %6 = vector.broadcast %cst_5 : f32 to vector<128x1xf32>
    %7 = arith.divf %5, %6 : vector<128x1xf32>
    %cst_6 = arith.constant dense<0.000000e+00> : vector<128xf32>
    %8 = vector.multi_reduction <add>, %3, %cst_6 [1] : vector<128x256xf32> to vector<128xf32>
    %9 = vector.shape_cast %8 : vector<128xf32> to vector<128x1xf32>
    %cst_7 = arith.constant 2.560000e+02 : f32
    %10 = vector.broadcast %cst_7 : f32 to vector<128x1xf32>
    %11 = arith.divf %9, %10 : vector<128x1xf32>
    %c0_8 = arith.constant 0 : index
    %c0_9 = arith.constant 0 : index
    %12 = vector.load %arg3[%c0_8, %c0_9] : memref<128x16xf32, #tpu.memory_space<vmem>>, vector<128x16xf32>
    %13 = vector.broadcast %7 : vector<128x1xf32> to vector<128x16xf32>
    %14 = arith.mulf %12, %13 : vector<128x16xf32>
    %c0_10 = arith.constant 0 : index
    %c0_11 = arith.constant 0 : index
    %15 = vector.load %arg4[%c0_10, %c0_11] : memref<128x16xf32, #tpu.memory_space<vmem>>, vector<128x16xf32>
    %16 = vector.broadcast %11 : vector<128x1xf32> to vector<128x16xf32>
    %17 = arith.mulf %15, %16 : vector<128x16xf32>
    %18 = arith.addf %14, %17 : vector<128x16xf32>
    %cst_12 = arith.constant dense<0.000000e+00> : vector<16xf32>
    %19 = vector.multi_reduction <add>, %18, %cst_12 [0] : vector<128x16xf32> to vector<16xf32>
    %20 = vector.shape_cast %19 : vector<16xf32> to vector<1x16xf32>
    %cst_13 = arith.constant 0.000000e+00 : f32
    %21 = vector.broadcast %cst_13 : f32 to vector<1x16xf32>
    %22 = arith.maximumf %20, %21 : vector<1x16xf32>
    %c0_14 = arith.constant 0 : index
    %c0_15 = arith.constant 0 : index
    %23 = vector.load %arg5[%c0_14, %c0_15] : memref<128x16xf32, #tpu.memory_space<vmem>>, vector<128x16xf32>
    %24 = vector.broadcast %22 : vector<1x16xf32> to vector<128x16xf32>
    %25 = arith.mulf %23, %24 : vector<128x16xf32>
    %cst_16 = arith.constant dense<0.000000e+00> : vector<128xf32>
    %26 = vector.multi_reduction <add>, %25, %cst_16 [1] : vector<128x16xf32> to vector<128xf32>
    %27 = vector.shape_cast %26 : vector<128xf32> to vector<128x1xf32>
    %cst_17 = arith.constant 0.000000e+00 : f32
    %28 = vector.broadcast %cst_17 : f32 to vector<128x1xf32>
    %29 = arith.subf %28, %27 : vector<128x1xf32>
    %30 = math.exp %29 : vector<128x1xf32>
    %cst_18 = arith.constant 1.000000e+00 : f32
    %31 = vector.broadcast %cst_18 : f32 to vector<128x1xf32>
    %32 = arith.addf %31, %30 : vector<128x1xf32>
    %cst_19 = arith.constant 1.000000e+00 : f32
    %33 = vector.broadcast %cst_19 : f32 to vector<128x1xf32>
    %34 = arith.divf %33, %32 : vector<128x1xf32>
    %35 = vector.broadcast %34 : vector<128x1xf32> to vector<128x256xf32>
    %36 = arith.mulf %35, %1 : vector<128x256xf32>
    %37 = arith.addf %36, %3 : vector<128x256xf32>
    %c0_20 = arith.constant 0 : index
    %c0_21 = arith.constant 0 : index
    %c0_22 = arith.constant 0 : index
    %38 = vector.load %arg6[%c0_20, %c0_21, %c0_22] : memref<1x128x256xf32, #tpu.memory_space<vmem>>, vector<1x128x256xf32>
    %39 = vector.shape_cast %38 : vector<1x128x256xf32> to vector<128x256xf32>
    %40 = vector.shape_cast %37 : vector<128x256xf32> to vector<1x128x256xf32>
    tpu.vector_store %arg6[%c0_20, %c0_21, %c0_22], %40 {strides = array<i32>} : memref<1x128x256xf32, #tpu.memory_space<vmem>>, vector<1x128x256xf32>,
    return
  }
  func.func @transform_0(%arg0: i32) -> (i32, i32, i32) {
    %c0_i32 = arith.constant 0 : i32
    %c0_i32_0 = arith.constant 0 : i32
    %c0_i32_1 = arith.constant 0 : i32
    return %arg0, %c0_i32, %c0_i32_0 : i32, i32, i32
  }
  func.func @transform_1(%arg0: i32) -> (i32, i32, i32) {
    %c0_i32 = arith.constant 0 : i32
    %c0_i32_0 = arith.constant 0 : i32
    %c0_i32_1 = arith.constant 0 : i32
    return %arg0, %c0_i32, %c0_i32_0 : i32, i32, i32
  }
  func.func @transform_2(%arg0: i32) -> (i32, i32) {
    %c0_i32 = arith.constant 0 : i32
    %c0_i32_0 = arith.constant 0 : i32
    %c0_i32_1 = arith.constant 0 : i32
    return %c0_i32, %c0_i32_0 : i32, i32
  }
  func.func @transform_3(%arg0: i32) -> (i32, i32) {
    %c0_i32 = arith.constant 0 : i32
    %c0_i32_0 = arith.constant 0 : i32
    %c0_i32_1 = arith.constant 0 : i32
    return %c0_i32, %c0_i32_0 : i32, i32
  }
  func.func @transform_4(%arg0: i32) -> (i32, i32) {
    %c0_i32 = arith.constant 0 : i32
    %c0_i32_0 = arith.constant 0 : i32
    %c0_i32_1 = arith.constant 0 : i32
    return %c0_i32, %c0_i32_0 : i32, i32
  }
  func.func @transform_5(%arg0: i32) -> (i32, i32, i32) {
    %c0_i32 = arith.constant 0 : i32
    %c0_i32_0 = arith.constant 0 : i32
    %c0_i32_1 = arith.constant 0 : i32
    return %arg0, %c0_i32, %c0_i32_0 : i32, i32, i32
  }
}

</mosaic_0001>

<llo_original>
// kernel: tpu_custom_call.1
$region0: #{tpu_custom_call.1}
  #allocation0 [shape = 'u32[]', space=smem, size = 0x4, offset = 0x4, fixed_abs, tag = 'smem constant byte address 0x4 - core index']
  #allocation1 [shape = 'u32[144,128]{1,0:T(1,128)}', space=vmem, size = 0x12000, scoped, tag = 'internal scratch']
  %s0 = inlined_call_operand.hbm [shape: f32[2,128,256], index: 0, kind: input, shape index: {}]
  %s1 = inlined_call_operand.hbm [shape: f32[2,128,256], index: 1, kind: input, shape index: {}]
  %s2 = inlined_call_operand.vmem [shape: f32[128,16], index: 2, kind: input, shape index: {}]
  %s3 = inlined_call_operand.vmem [shape: f32[128,16], index: 3, kind: input, shape index: {}]
  %s4 = inlined_call_operand.vmem [shape: f32[128,16], index: 4, kind: input, shape index: {}]
  %s5 = inlined_call_operand.hbm [shape: f32[2,128,256], index: 5, kind: output, shape index: {}]
  %s6 = sld [smem:[#allocation0]]
  $region61: #{tpu_custom_call.1} parent=0
    _
  %s8 = ssub.s32 1, %s6
  %s9 = scalar_select 0, %s8, %s6
  $region1: #{tpu_custom_call.1} parent=0
    #allocation2 [shape = 'u8[262144]{0}', space=vmem, size = 0x40000, scoped, tag = 'input window, operand 0']
    #allocation3 [shape = 's32[2]{0}', space=sflag, size = 0x8, scoped, tag = 'scoped memory for tpu_custom_call.1']
    #allocation4 [shape = 's32[2]{0}', space=sflag, size = 0x8, scoped, tag = 'scoped memory for tpu_custom_call.1']
    #allocation5 [shape = 'u8[262144]{0}', space=vmem, size = 0x40000, scoped, tag = 'input window, operand 1']
    #allocation6 [shape = 's32[2]{0}', space=sflag, size = 0x8, scoped, tag = 'scoped memory for tpu_custom_call.1']
    #allocation7 [shape = 'u8[262144]{0}', space=vmem, size = 0x40000, scoped, tag = 'output window, operand 0']
    %10 = vsyncpa [#allocation3], 0
    %s11 = scalar_lea.sflag [#allocation3], 1
    %12 = vsyncpa %s11, 0
    %13 = vsyncpa [#allocation6], 0
    %s14 = scalar_lea.sflag [#allocation6], 1
    %15 = vsyncpa %s14, 0
    %16 = vsyncpa [#allocation4], 0
    %s17 = scalar_lea.sflag [#allocation4], 1
    %18 = vsyncpa %s17, 0
    loop: start=0, step=1, limit=4
    $region2: #{tpu_custom_call.1} parent=1 // loop_pre_header
      _
    $region3: #{tpu_custom_call.1} parent=1 // loop_header
      %s20 = sphi 0, %s24
      %p21 = scmp.ge.s32.totalorder %s20, 4
      %s30 = sphi 0, %s32
      %s33 = sphi 0, %s30
      %s34 = sphi 0, %s33
      %s50 = sphi 0, %s34
      %s56 = sphi 0, %s58
      %s59 = sphi 0, %s56
      %s60 = sphi 0, %s59
      %s76 = sphi 0, %s60
      %s80 = sphi 0, %s80
      %s82 = sphi 0, %s80
      %s83 = sphi 0, %s82
      %s97 = sphi 0, %s83
      %s101 = sphi 0, %s101
      %s103 = sphi 0, %s101
      %s104 = sphi 0, %s103
      %s118 = sphi 0, %s104
      %s122 = sphi 0, %s122
      %s124 = sphi 0, %s122
      %s125 = sphi 0, %s124
      %s139 = sphi 0, %s125
      %s145 = sphi 0, %s147
      %s148 = sphi 0, %s145
      %s149 = sphi 0, %s148
      %s165 = sphi 0, %s149
    $region4: #{tpu_custom_call.1} parent=1 // loop_header_branch
      %23 = sbr.rel (%p21) target = $region8
    $region5: #{tpu_custom_call.1} parent=1 // loop_body
      %s25 = ssub.s32 %s20, 1
      %s26 = ssub.s32 %s20, 2
      %s27 = sadd.s32 %s20, 1
      %s28 = ssub.s32 %s20, %s27
      %p29 = scmp.eq.s32.totalorder %s28, 0
      %s31 = sadd.s32 %s30, 1
      %s32 = scalar_select %p29, %s30, %s31
      %p35 = pneg %p29
      %p36 = scmp.eq.s32.totalorder %s20, 1
      %p37 = por %p35, %p36
      %p38 = scmp.ne.s32.totalorder %s30, %s33
      %p39 = scmp.eq.s32.totalorder %s20, 0
      %p40 = por %p38, %p39
      %p41 = scmp.ne.s32.totalorder %s30, %s33
      %p42 = scmp.eq.s32.totalorder %s25, 1
      %p43 = por %p41, %p42
      %p44 = scmp.ne.s32.totalorder %s33, %s34
      %p45 = scmp.eq.s32.totalorder %s25, 0
      %p46 = por %p44, %p45
      %p47 = scmp.ne.s32.totalorder %s33, %s34
      %p48 = scmp.eq.s32.totalorder %s26, 1
      %p49 = por %p47, %p48
      %p51 = scmp.ne.s32.totalorder %s34, %s50
      %p52 = scmp.eq.s32.totalorder %s26, 0
      %p53 = por %p51, %p52
      %s54 = ssub.s32 %s20, %s27
      %p55 = scmp.eq.s32.totalorder %s54, 0
      %s57 = sadd.s32 %s56, 1
      %s58 = scalar_select %p55, %s56, %s57
      %p61 = pneg %p55
      %p62 = scmp.eq.s32.totalorder %s20, 1
      %p63 = por %p61, %p62
      %p64 = scmp.ne.s32.totalorder %s56, %s59
      %p65 = scmp.eq.s32.totalorder %s20, 0
      %p66 = por %p64, %p65
      %p67 = scmp.ne.s32.totalorder %s56, %s59
      %p68 = scmp.eq.s32.totalorder %s25, 1
      %p69 = por %p67, %p68
      %p70 = scmp.ne.s32.totalorder %s59, %s60
      %p71 = scmp.eq.s32.totalorder %s25, 0
      %p72 = por %p70, %p71
      %p73 = scmp.ne.s32.totalorder %s59, %s60
      %p74 = scmp.eq.s32.totalorder %s26, 1
      %p75 = por %p73, %p74
      %p77 = scmp.ne.s32.totalorder %s60, %s76
      %p78 = scmp.eq.s32.totalorder %s26, 0
      %p79 = por %p77, %p78
      %s81 = sadd.s32 %s80, 1
      %p84 = scmp.eq.s32.totalorder %s20, 1
      %p85 = scmp.ne.s32.totalorder %s80, %s82
      %p86 = scmp.eq.s32.totalorder %s20, 0
      %p87 = por %p85, %p86
      %p88 = scmp.ne.s32.totalorder %s80, %s82
      %p89 = scmp.eq.s32.totalorder %s25, 1
      %p90 = por %p88, %p89
      %p91 = scmp.ne.s32.totalorder %s82, %s83
      %p92 = scmp.eq.s32.totalorder %s25, 0
      %p93 = por %p91, %p92
      %p94 = scmp.ne.s32.totalorder %s82, %s83
      %p95 = scmp.eq.s32.totalorder %s26, 1
      %p96 = por %p94, %p95
      %p98 = scmp.ne.s32.totalorder %s83, %s97
      %p99 = scmp.eq.s32.totalorder %s26, 0
      %p100 = por %p98, %p99
      %s102 = sadd.s32 %s101, 1
      %p105 = scmp.eq.s32.totalorder %s20, 1
      %p106 = scmp.ne.s32.totalorder %s101, %s103
      %p107 = scmp.eq.s32.totalorder %s20, 0
      %p108 = por %p106, %p107
      %p109 = scmp.ne.s32.totalorder %s101, %s103
      %p110 = scmp.eq.s32.totalorder %s25, 1
      %p111 = por %p109, %p110
      %p112 = scmp.ne.s32.totalorder %s103, %s104
      %p113 = scmp.eq.s32.totalorder %s25, 0
      %p114 = por %p112, %p113
      %p115 = scmp.ne.s32.totalorder %s103, %s104
      %p116 = scmp.eq.s32.totalorder %s26, 1
      %p117 = por %p115, %p116
      %p119 = scmp.ne.s32.totalorder %s104, %s118
      %p120 = scmp.eq.s32.totalorder %s26, 0
      %p121 = por %p119, %p120
      %s123 = sadd.s32 %s122, 1
      %p126 = scmp.eq.s32.totalorder %s20, 1
      %p127 = scmp.ne.s32.totalorder %s122, %s124
      %p128 = scmp.eq.s32.totalorder %s20, 0
      %p129 = por %p127, %p128
      %p130 = scmp.ne.s32.totalorder %s122, %s124
      %p131 = scmp.eq.s32.totalorder %s25, 1
      %p132 = por %p130, %p131
      %p133 = scmp.ne.s32.totalorder %s124, %s125
      %p134 = scmp.eq.s32.totalorder %s25, 0
      %p135 = por %p133, %p134
      %p136 = scmp.ne.s32.totalorder %s124, %s125
      %p137 = scmp.eq.s32.totalorder %s26, 1
      %p138 = por %p136, %p137
      %p140 = scmp.ne.s32.totalorder %s125, %s139
      %p141 = scmp.eq.s32.totalorder %s26, 0
      %p142 = por %p140, %p141
      %s143 = ssub.s32 %s20, %s27
      %p144 = scmp.eq.s32.totalorder %s143, 0
      %s146 = sadd.s32 %s145, 1
      %s147 = scalar_select %p144, %s145, %s146
      %p150 = pneg %p144
      %p151 = scmp.eq.s32.totalorder %s20, 1
      %p152 = por %p150, %p151
      %p153 = scmp.ne.s32.totalorder %s145, %s148
      %p154 = scmp.eq.s32.totalorder %s20, 0
      %p155 = por %p153, %p154
      %p156 = scmp.ne.s32.totalorder %s145, %s148
      %p157 = scmp.eq.s32.totalorder %s25, 1
      %p158 = por %p156, %p157
      %p159 = scmp.ne.s32.totalorder %s148, %s149
      %p160 = scmp.eq.s32.totalorder %s25, 0
      %p161 = por %p159, %p160
      %p162 = scmp.ne.s32.totalorder %s148, %s149
      %p163 = scmp.eq.s32.totalorder %s26, 1
      %p164 = por %p162, %p163
      %p166 = scmp.ne.s32.totalorder %s149, %s165
      %p167 = scmp.eq.s32.totalorder %s26, 0
      %p168 = por %p166, %p167
      %p169 = scmp.le.s32.totalorder 1, %s20
      %p170 = scmp.lt.s32.totalorder %s20, 3
      %p171 = pnand %p169, %p170
      %p172 = pneg %p171
      // Predicated region
      $region9: #{tpu_custom_call.1} parent=5 // pred_check
        _
      $region10: #{tpu_custom_call.1} parent=5 // pred_check_branch
        %174 = sbr.rel (%p171) target = $region12
      $region11: #{tpu_custom_call.1} parent=5 // pred_region
        %s175 = ssub.s32 %s20, 1
        // Predicated region
        $region13: #{tpu_custom_call.1} parent=11 // pred_check
          %p176 = pneg %p93
        $region14: #{tpu_custom_call.1} parent=11 // pred_check_branch
          %178 = sbr.rel (%p176) target = $region16
        $region15: #{tpu_custom_call.1} parent=11 // pred_region
          _
        $region16: #{tpu_custom_call.1} parent=11 // pred_fallthru
          _
        // Predicated region
        $region17: #{tpu_custom_call.1} parent=11 // pred_check
          %p179 = pneg %p114
        $region18: #{tpu_custom_call.1} parent=11 // pred_check_branch
          %181 = sbr.rel (%p179) target = $region20
        $region19: #{tpu_custom_call.1} parent=11 // pred_region
          _
        $region20: #{tpu_custom_call.1} parent=11 // pred_fallthru
          _
        // Predicated region
        $region21: #{tpu_custom_call.1} parent=11 // pred_check
          %p182 = pneg %p135
        $region22: #{tpu_custom_call.1} parent=11 // pred_check_branch
          %184 = sbr.rel (%p182) target = $region24
        $region23: #{tpu_custom_call.1} parent=11 // pred_region
          _
        $region24: #{tpu_custom_call.1} parent=11 // pred_fallthru
          _
      $region12: #{tpu_custom_call.1} parent=5 // pred_fallthru
        _
      %p185 = scmp.lt.s32.totalorder %s20, 2
      // Predicated region
      $region25: #{tpu_custom_call.1} parent=5 // pred_check
        %p186 = pneg %p185
      $region26: #{tpu_custom_call.1} parent=5 // pred_check_branch
        %188 = sbr.rel (%p186) target = $region28
      $region27: #{tpu_custom_call.1} parent=5 // pred_region
        // Predicated region
        $region29: #{tpu_custom_call.1} parent=27 // pred_check
          %p189 = pneg %p40
        $region30: #{tpu_custom_call.1} parent=27 // pred_check_branch
          %191 = sbr.rel (%p189) target = $region32
        $region31: #{tpu_custom_call.1} parent=27 // pred_region
          %s192 = sand.u32 %s30, 1
          %s193 = scalar_lea.sflag [#allocation3], %s192
          %s194 = sand.u32 %s30, 1
          %s195 = smul.addr %s194, 256
          %s196 = scalar_lea.vmem [#allocation2], %s195
          %s198 = ssub.s32 4096, 4096
          %199 = vsyncadd %s193, %s198
          %s200 = smul.addr %s20, 32
          %s201 = smul.addr %s200, 128
          %s202 = scalar_lea.hbm %s0, %s201
          %s203 = sshll.u32 %s196, 4
          %s204 = int_to_ptr.vmem [resolvable:$true] %s203
          %209 = dma.hbm_to_vmem [thread:$0]  %s202, 4096, %s204, %s193, 256, 256, 16
        $region32: #{tpu_custom_call.1} parent=27 // pred_fallthru
          _
        // Predicated region
        $region33: #{tpu_custom_call.1} parent=27 // pred_check
          %p210 = pneg %p66
        $region34: #{tpu_custom_call.1} parent=27 // pred_check_branch
          %212 = sbr.rel (%p210) target = $region36
        $region35: #{tpu_custom_call.1} parent=27 // pred_region
          %s213 = sand.u32 %s56, 1
          %s214 = scalar_lea.sflag [#allocation6], %s213
          %s215 = sand.u32 %s56, 1
          %s216 = smul.addr %s215, 256
          %s217 = scalar_lea.vmem [#allocation5], %s216
          %s219 = ssub.s32 4096, 4096
          %220 = vsyncadd %s214, %s219
          %s221 = smul.addr %s20, 32
          %s222 = smul.addr %s221, 128
          %s223 = scalar_lea.hbm %s1, %s222
          %s224 = sshll.u32 %s217, 4
          %s225 = int_to_ptr.vmem [resolvable:$true] %s224
          %230 = dma.hbm_to_vmem [thread:$0]  %s223, 4096, %s225, %s214, 256, 256, 16
        $region36: #{tpu_custom_call.1} parent=27 // pred_fallthru
          _
      $region28: #{tpu_custom_call.1} parent=5 // pred_fallthru
        _
      %p231 = scmp.le.s32.totalorder 1, %s20
      %p232 = scmp.lt.s32.totalorder %s20, 3
      %p233 = pnand %p231, %p232
      %p234 = pneg %p233
      // Predicated region
      $region37: #{tpu_custom_call.1} parent=5 // pred_check
        _
      $region38: #{tpu_custom_call.1} parent=5 // pred_check_branch
        %236 = sbr.rel (%p233) target = $region40
      $region39: #{tpu_custom_call.1} parent=5 // pred_region
        %s237 = ssub.s32 %s20, 1
        %s238 = sand.u32 %s33, 1
        %s239 = scalar_lea.sflag [#allocation3], %s238
        %s240 = sand.u32 %s33, 1
        %s241 = smul.addr %s240, 256
        %s242 = scalar_lea.vmem [#allocation2], %s241
        // Predicated region
        $region41: #{tpu_custom_call.1} parent=39 // pred_check
          %p243 = pneg %p46
        $region42: #{tpu_custom_call.1} parent=39 // pred_check_branch
          %245 = sbr.rel (%p243) target = $region44
        $region43: #{tpu_custom_call.1} parent=39 // pred_region
          %246 = dma.done %s239, 4096
        $region44: #{tpu_custom_call.1} parent=39 // pred_fallthru
          _
        %s247 = sand.u32 %s59, 1
        %s248 = scalar_lea.sflag [#allocation6], %s247
        %s249 = sand.u32 %s59, 1
        %s250 = smul.addr %s249, 256
        %s251 = scalar_lea.vmem [#allocation5], %s250
        // Predicated region
        $region45: #{tpu_custom_call.1} parent=39 // pred_check
          %p252 = pneg %p72
        $region46: #{tpu_custom_call.1} parent=39 // pred_check_branch
          %254 = sbr.rel (%p252) target = $region48
        $region47: #{tpu_custom_call.1} parent=39 // pred_region
          %255 = dma.done %s248, 4096
        $region48: #{tpu_custom_call.1} parent=39 // pred_fallthru
          _
        %s256 = sand.u32 %s33, 1
        %s257 = scalar_lea.sflag [#allocation3], %s256
        %s258 = sand.u32 %s33, 1
        %s259 = smul.addr %s258, 256
        %s260 = scalar_lea.vmem [#allocation2], %s259
        %p261 = pneg %p46
        %p262 = pneg %p43
        %s263 = sand.u32 %s59, 1
        %s264 = scalar_lea.sflag [#allocation6], %s263
        %s265 = sand.u32 %s59, 1
        %s266 = smul.addr %s265, 256
        %s267 = scalar_lea.vmem [#allocation5], %s266
        %p268 = pneg %p72
        %p269 = pneg %p69
        %p270 = pneg %p93
        %p271 = pneg %p90
        %p272 = pneg %p114
        %p273 = pneg %p111
        %p274 = pneg %p135
        %p275 = pneg %p132
        %p276 = pneg %p161
        %p277 = pneg %p158
        %s278 = sand.u32 %s148, 1
        %s279 = scalar_lea.sflag [#allocation4], %s278
        %s280 = sand.u32 %s148, 1
        %s281 = smul.addr %s280, 256
        %s282 = scalar_lea.vmem [#allocation7], %s281
        %v283 = vld [vmem:[%s242] sm:$0xff]
        %v284 = vld [vmem:[%s242 + $0x8] sm:$0xff]
        %v285 = vld [vmem:[%s242 + $0x10] sm:$0xff]
        %v286 = vld [vmem:[%s242 + $0x18] sm:$0xff]
        %v287 = vld [vmem:[%s242 + $0x20] sm:$0xff]
        %v288 = vld [vmem:[%s242 + $0x28] sm:$0xff]
        %v289 = vld [vmem:[%s242 + $0x30] sm:$0xff]
        %v290 = vld [vmem:[%s242 + $0x38] sm:$0xff]
        %v291 = vld [vmem:[%s242 + $0x40] sm:$0xff]
        %v292 = vld [vmem:[%s242 + $0x48] sm:$0xff]
        %v293 = vld [vmem:[%s242 + $0x50] sm:$0xff]
        %v294 = vld [vmem:[%s242 + $0x58] sm:$0xff]
        %v295 = vld [vmem:[%s242 + $0x60] sm:$0xff]
        %v296 = vld [vmem:[%s242 + $0x68] sm:$0xff]
        %v297 = vld [vmem:[%s242 + $0x70] sm:$0xff]
        %v298 = vld [vmem:[%s242 + $0x78] sm:$0xff]
        %v299 = vld [vmem:[%s242 + $0x80] sm:$0xff]
        %v300 = vld [vmem:[%s242 + $0x88] sm:$0xff]
        %v301 = vld [vmem:[%s242 + $0x90] sm:$0xff]
        %v302 = vld [vmem:[%s242 + $0x98] sm:$0xff]
        %v303 = vld [vmem:[%s242 + $0xa0] sm:$0xff]
        %v304 = vld [vmem:[%s242 + $0xa8] sm:$0xff]
        %v305 = vld [vmem:[%s242 + $0xb0] sm:$0xff]
        %v306 = vld [vmem:[%s242 + $0xb8] sm:$0xff]
        %v307 = vld [vmem:[%s242 + $0xc0] sm:$0xff]
        %v308 = vld [vmem:[%s242 + $0xc8] sm:$0xff]
        %v309 = vld [vmem:[%s242 + $0xd0] sm:$0xff]
        %v310 = vld [vmem:[%s242 + $0xd8] sm:$0xff]
        %v311 = vld [vmem:[%s242 + $0xe0] sm:$0xff]
        %v312 = vld [vmem:[%s242 + $0xe8] sm:$0xff]
        %v313 = vld [vmem:[%s242 + $0xf0] sm:$0xff]
        %v314 = vld [vmem:[%s242 + $0xf8] sm:$0xff]
        %v315 = vld [vmem:[%s251] sm:$0xff]
        %v316 = vld [vmem:[%s251 + $0x8] sm:$0xff]
        %v317 = vld [vmem:[%s251 + $0x10] sm:$0xff]
        %v318 = vld [vmem:[%s251 + $0x18] sm:$0xff]
        %v319 = vld [vmem:[%s251 + $0x20] sm:$0xff]
        %v320 = vld [vmem:[%s251 + $0x28] sm:$0xff]
        %v321 = vld [vmem:[%s251 + $0x30] sm:$0xff]
        %v322 = vld [vmem:[%s251 + $0x38] sm:$0xff]
        %v323 = vld [vmem:[%s251 + $0x40] sm:$0xff]
        %v324 = vld [vmem:[%s251 + $0x48] sm:$0xff]
        %v325 = vld [vmem:[%s251 + $0x50] sm:$0xff]
        %v326 = vld [vmem:[%s251 + $0x58] sm:$0xff]
        %v327 = vld [vmem:[%s251 + $0x60] sm:$0xff]
        %v328 = vld [vmem:[%s251 + $0x68] sm:$0xff]
        %v329 = vld [vmem:[%s251 + $0x70] sm:$0xff]
        %v330 = vld [vmem:[%s251 + $0x78] sm:$0xff]
        %v331 = vld [vmem:[%s251 + $0x80] sm:$0xff]
        %v332 = vld [vmem:[%s251 + $0x88] sm:$0xff]
        %v333 = vld [vmem:[%s251 + $0x90] sm:$0xff]
        %v334 = vld [vmem:[%s251 + $0x98] sm:$0xff]
        %v335 = vld [vmem:[%s251 + $0xa0] sm:$0xff]
        %v336 = vld [vmem:[%s251 + $0xa8] sm:$0xff]
        %v337 = vld [vmem:[%s251 + $0xb0] sm:$0xff]
        %v338 = vld [vmem:[%s251 + $0xb8] sm:$0xff]
        %v339 = vld [vmem:[%s251 + $0xc0] sm:$0xff]
        %v340 = vld [vmem:[%s251 + $0xc8] sm:$0xff]
        %v341 = vld [vmem:[%s251 + $0xd0] sm:$0xff]
        %v342 = vld [vmem:[%s251 + $0xd8] sm:$0xff]
        %v343 = vld [vmem:[%s251 + $0xe0] sm:$0xff]
        %v344 = vld [vmem:[%s251 + $0xe8] sm:$0xff]
        %v345 = vld [vmem:[%s251 + $0xf0] sm:$0xff]
        %v346 = vld [vmem:[%s251 + $0xf8] sm:$0xff]
        %v347 = vadd.f32 %v283, %v284
        %348 = vadd.xlane.f32.xlu0 %v347
        %v349 = vpop.xlane.xlu0 %348
        %v350 = vadd.f32 %v285, %v286
        %351 = vadd.xlane.f32.xlu0 %v350
        %v352 = vpop.xlane.xlu0 %351
        %v353 = vadd.f32 %v287, %v288
        %354 = vadd.xlane.f32.xlu0 %v353
        %v355 = vpop.xlane.xlu0 %354
        %v356 = vadd.f32 %v289, %v290
        %357 = vadd.xlane.f32.xlu0 %v356
        %v358 = vpop.xlane.xlu0 %357
        %v359 = vadd.f32 %v291, %v292
        %360 = vadd.xlane.f32.xlu0 %v359
        %v361 = vpop.xlane.xlu0 %360
        %v362 = vadd.f32 %v293, %v294
        %363 = vadd.xlane.f32.xlu0 %v362
        %v364 = vpop.xlane.xlu0 %363
        %v365 = vadd.f32 %v295, %v296
        %366 = vadd.xlane.f32.xlu0 %v365
        %v367 = vpop.xlane.xlu0 %366
        %v368 = vadd.f32 %v297, %v298
        %369 = vadd.xlane.f32.xlu0 %v368
        %v370 = vpop.xlane.xlu0 %369
        %v371 = vadd.f32 %v299, %v300
        %372 = vadd.xlane.f32.xlu0 %v371
        %v373 = vpop.xlane.xlu0 %372
        %v374 = vadd.f32 %v301, %v302
        %375 = vadd.xlane.f32.xlu0 %v374
        %v376 = vpop.xlane.xlu0 %375
        %v377 = vadd.f32 %v303, %v304
        %378 = vadd.xlane.f32.xlu0 %v377
        %v379 = vpop.xlane.xlu0 %378
        %v380 = vadd.f32 %v305, %v306
        %381 = vadd.xlane.f32.xlu0 %v380
        %v382 = vpop.xlane.xlu0 %381
        %v383 = vadd.f32 %v307, %v308
        %384 = vadd.xlane.f32.xlu0 %v383
        %v385 = vpop.xlane.xlu0 %384
        %v386 = vadd.f32 %v309, %v310
        %387 = vadd.xlane.f32.xlu0 %v386
        %v388 = vpop.xlane.xlu0 %387
        %v389 = vadd.f32 %v311, %v312
        %390 = vadd.xlane.f32.xlu0 %v389
        %v391 = vpop.xlane.xlu0 %390
        %v392 = vadd.f32 %v313, %v314
        %393 = vadd.xlane.f32.xlu0 %v392
        %v394 = vpop.xlane.xlu0 %393
        %v395 = vrcp.pop 256.0
        %v396 = vmul.f32 %v349, %v395
        %v397 = vmul.f32 %v352, %v395
        %v398 = vmul.f32 %v355, %v395
        %v399 = vmul.f32 %v358, %v395
        %v400 = vmul.f32 %v361, %v395
        %v401 = vmul.f32 %v364, %v395
        %v402 = vmul.f32 %v367, %v395
        %v403 = vmul.f32 %v370, %v395
        %v404 = vmul.f32 %v373, %v395
        %v405 = vmul.f32 %v376, %v395
        %v406 = vmul.f32 %v379, %v395
        %v407 = vmul.f32 %v382, %v395
        %v408 = vmul.f32 %v385, %v395
        %v409 = vmul.f32 %v388, %v395
        %v410 = vmul.f32 %v391, %v395
        %v411 = vmul.f32 %v394, %v395
        %v412 = vadd.f32 %v315, %v316
        %413 = vadd.xlane.f32.xlu0 %v412
        %v414 = vpop.xlane.xlu0 %413
        %v415 = vadd.f32 %v317, %v318
        %416 = vadd.xlane.f32.xlu0 %v415
        %v417 = vpop.xlane.xlu0 %416
        %v418 = vadd.f32 %v319, %v320
        %419 = vadd.xlane.f32.xlu0 %v418
        %v420 = vpop.xlane.xlu0 %419
        %v421 = vadd.f32 %v321, %v322
        %422 = vadd.xlane.f32.xlu0 %v421
        %v423 = vpop.xlane.xlu0 %422
        %v424 = vadd.f32 %v323, %v324
        %425 = vadd.xlane.f32.xlu0 %v424
        %v426 = vpop.xlane.xlu0 %425
        %v427 = vadd.f32 %v325, %v326
        %428 = vadd.xlane.f32.xlu0 %v427
        %v429 = vpop.xlane.xlu0 %428
        %v430 = vadd.f32 %v327, %v328
        %431 = vadd.xlane.f32.xlu0 %v430
        %v432 = vpop.xlane.xlu0 %431
        %v433 = vadd.f32 %v329, %v330
        %434 = vadd.xlane.f32.xlu0 %v433
        %v435 = vpop.xlane.xlu0 %434
        %v436 = vadd.f32 %v331, %v332
        %437 = vadd.xlane.f32.xlu0 %v436
        %v438 = vpop.xlane.xlu0 %437
        %v439 = vadd.f32 %v333, %v334
        %440 = vadd.xlane.f32.xlu0 %v439
        %v441 = vpop.xlane.xlu0 %440
        %v442 = vadd.f32 %v335, %v336
        %443 = vadd.xlane.f32.xlu0 %v442
        %v444 = vpop.xlane.xlu0 %443
        %v445 = vadd.f32 %v337, %v338
        %446 = vadd.xlane.f32.xlu0 %v445
        %v447 = vpop.xlane.xlu0 %446
        %v448 = vadd.f32 %v339, %v340
        %449 = vadd.xlane.f32.xlu0 %v448
        %v450 = vpop.xlane.xlu0 %449
        %v451 = vadd.f32 %v341, %v342
        %452 = vadd.xlane.f32.xlu0 %v451
        %v453 = vpop.xlane.xlu0 %452
        %v454 = vadd.f32 %v343, %v344
        %455 = vadd.xlane.f32.xlu0 %v454
        %v456 = vpop.xlane.xlu0 %455
        %v457 = vadd.f32 %v345, %v346
        %458 = vadd.xlane.f32.xlu0 %v457
        %v459 = vpop.xlane.xlu0 %458
        %v460 = vmul.f32 %v414, %v395
        %v461 = vmul.f32 %v417, %v395
        %v462 = vmul.f32 %v420, %v395
        %v463 = vmul.f32 %v423, %v395
        %v464 = vmul.f32 %v426, %v395
        %v465 = vmul.f32 %v429, %v395
        %v466 = vmul.f32 %v432, %v395
        %v467 = vmul.f32 %v435, %v395
        %v468 = vmul.f32 %v438, %v395
        %v469 = vmul.f32 %v441, %v395
        %v470 = vmul.f32 %v444, %v395
        %v471 = vmul.f32 %v447, %v395
        %v472 = vmul.f32 %v450, %v395
        %v473 = vmul.f32 %v453, %v395
        %v474 = vmul.f32 %v456, %v395
        %v475 = vmul.f32 %v459, %v395
        %v476 = vld [vmem:[%s2] sm:$0xff]
        %v477 = vld [vmem:[%s2 + $0x8] sm:$0xff]
        %v478 = vld [vmem:[%s2 + $0x10] sm:$0xff]
        %v479 = vld [vmem:[%s2 + $0x18] sm:$0xff]
        %v480 = vld [vmem:[%s2 + $0x20] sm:$0xff]
        %v481 = vld [vmem:[%s2 + $0x28] sm:$0xff]
        %v482 = vld [vmem:[%s2 + $0x30] sm:$0xff]
        %v483 = vld [vmem:[%s2 + $0x38] sm:$0xff]
        %v484 = vld [vmem:[%s2 + $0x40] sm:$0xff]
        %v485 = vld [vmem:[%s2 + $0x48] sm:$0xff]
        %v486 = vld [vmem:[%s2 + $0x50] sm:$0xff]
        %v487 = vld [vmem:[%s2 + $0x58] sm:$0xff]
        %v488 = vld [vmem:[%s2 + $0x60] sm:$0xff]
        %v489 = vld [vmem:[%s2 + $0x68] sm:$0xff]
        %v490 = vld [vmem:[%s2 + $0x70] sm:$0xff]
        %v491 = vld [vmem:[%s2 + $0x78] sm:$0xff]
        %v492 = vmul.f32 %v476, %v396
        %v493 = vmul.f32 %v477, %v397
        %v494 = vmul.f32 %v478, %v398
        %v495 = vmul.f32 %v479, %v399
        %v496 = vmul.f32 %v480, %v400
        %v497 = vmul.f32 %v481, %v401
        %v498 = vmul.f32 %v482, %v402
        %v499 = vmul.f32 %v483, %v403
        %v500 = vmul.f32 %v484, %v404
        %v501 = vmul.f32 %v485, %v405
        %v502 = vmul.f32 %v486, %v406
        %v503 = vmul.f32 %v487, %v407
        %v504 = vmul.f32 %v488, %v408
        %v505 = vmul.f32 %v489, %v409
        %v506 = vmul.f32 %v490, %v410
        %v507 = vmul.f32 %v491, %v411
        %v508 = vld [vmem:[%s3] sm:$0xff]
        %v509 = vld [vmem:[%s3 + $0x8] sm:$0xff]
        %v510 = vld [vmem:[%s3 + $0x10] sm:$0xff]
        %v511 = vld [vmem:[%s3 + $0x18] sm:$0xff]
        %v512 = vld [vmem:[%s3 + $0x20] sm:$0xff]
        %v513 = vld [vmem:[%s3 + $0x28] sm:$0xff]
        %v514 = vld [vmem:[%s3 + $0x30] sm:$0xff]
        %v515 = vld [vmem:[%s3 + $0x38] sm:$0xff]
        %v516 = vld [vmem:[%s3 + $0x40] sm:$0xff]
        %v517 = vld [vmem:[%s3 + $0x48] sm:$0xff]
        %v518 = vld [vmem:[%s3 + $0x50] sm:$0xff]
        %v519 = vld [vmem:[%s3 + $0x58] sm:$0xff]
        %v520 = vld [vmem:[%s3 + $0x60] sm:$0xff]
        %v521 = vld [vmem:[%s3 + $0x68] sm:$0xff]
        %v522 = vld [vmem:[%s3 + $0x70] sm:$0xff]
        %v523 = vld [vmem:[%s3 + $0x78] sm:$0xff]
        %v524 = vmul.f32 %v508, %v460
        %v525 = vmul.f32 %v509, %v461
        %v526 = vmul.f32 %v510, %v462
        %v527 = vmul.f32 %v511, %v463
        %v528 = vmul.f32 %v512, %v464
        %v529 = vmul.f32 %v513, %v465
        %v530 = vmul.f32 %v514, %v466
        %v531 = vmul.f32 %v515, %v467
        %v532 = vmul.f32 %v516, %v468
        %v533 = vmul.f32 %v517, %v469
        %v534 = vmul.f32 %v518, %v470
        %v535 = vmul.f32 %v519, %v471
        %v536 = vmul.f32 %v520, %v472
        %v537 = vmul.f32 %v521, %v473
        %v538 = vmul.f32 %v522, %v474
        %v539 = vmul.f32 %v523, %v475
        %v540 = vadd.f32 %v492, %v524
        %v541 = vadd.f32 %v493, %v525
        %v542 = vadd.f32 %v494, %v526
        %v543 = vadd.f32 %v495, %v527
        %v544 = vadd.f32 %v496, %v528
        %v545 = vadd.f32 %v497, %v529
        %v546 = vadd.f32 %v498, %v530
        %v547 = vadd.f32 %v499, %v531
        %v548 = vadd.f32 %v500, %v532
        %v549 = vadd.f32 %v501, %v533
        %v550 = vadd.f32 %v502, %v534
        %v551 = vadd.f32 %v503, %v535
        %v552 = vadd.f32 %v504, %v536
        %v553 = vadd.f32 %v505, %v537
        %v554 = vadd.f32 %v506, %v538
        %v555 = vadd.f32 %v507, %v539
        %vm556 = vcmask 130048
        %v557 = vsel %vm556, %v540, 0.0
        %v558 = vsel %vm556, %v541, 0.0
        %v559 = vadd.f32 %v557, %v558
        %v560 = vsel %vm556, %v542, 0.0
        %v561 = vadd.f32 %v559, %v560
        %v562 = vsel %vm556, %v543, 0.0
        %v563 = vadd.f32 %v561, %v562
        %v564 = vsel %vm556, %v544, 0.0
        %v565 = vadd.f32 %v563, %v564
        %v566 = vsel %vm556, %v545, 0.0
        %v567 = vadd.f32 %v565, %v566
        %v568 = vsel %vm556, %v546, 0.0
        %v569 = vadd.f32 %v567, %v568
        %v570 = vsel %vm556, %v547, 0.0
        %v571 = vadd.f32 %v569, %v570
        %v572 = vsel %vm556, %v548, 0.0
        %v573 = vadd.f32 %v571, %v572
        %v574 = vsel %vm556, %v549, 0.0
        %v575 = vadd.f32 %v573, %v574
        %v576 = vsel %vm556, %v550, 0.0
        %v577 = vadd.f32 %v575, %v576
        %v578 = vsel %vm556, %v551, 0.0
        %v579 = vadd.f32 %v577, %v578
        %v580 = vsel %vm556, %v552, 0.0
        %v581 = vadd.f32 %v579, %v580
        %v582 = vsel %vm556, %v553, 0.0
        %v583 = vadd.f32 %v581, %v582
        %v584 = vsel %vm556, %v554, 0.0
        %v585 = vadd.f32 %v583, %v584
        %v586 = vsel %vm556, %v555, 0.0
        %v587 = vadd.f32 %v585, %v586
        %v588 = vrot.slane %v587, 4
        %v589 = vadd.f32 %v587, %v588
        %v590 = vrot.slane %v589, 2
        %v591 = vadd.f32 %v589, %v590
        %v592 = vrot.slane %v591, 1
        %v593 = vadd.f32 %v591, %v592
        %v594 = vmax.f32 %v593, 0.0
        %v595 = vld [vmem:[%s4] sm:$0xff]
        %v596 = vld [vmem:[%s4 + $0x8] sm:$0xff]
        %v597 = vld [vmem:[%s4 + $0x10] sm:$0xff]
        %v598 = vld [vmem:[%s4 + $0x18] sm:$0xff]
        %v599 = vld [vmem:[%s4 + $0x20] sm:$0xff]
        %v600 = vld [vmem:[%s4 + $0x28] sm:$0xff]
        %v601 = vld [vmem:[%s4 + $0x30] sm:$0xff]
        %v602 = vld [vmem:[%s4 + $0x38] sm:$0xff]
        %v603 = vld [vmem:[%s4 + $0x40] sm:$0xff]
        %v604 = vld [vmem:[%s4 + $0x48] sm:$0xff]
        %v605 = vld [vmem:[%s4 + $0x50] sm:$0xff]
        %v606 = vld [vmem:[%s4 + $0x58] sm:$0xff]
        %v607 = vld [vmem:[%s4 + $0x60] sm:$0xff]
        %v608 = vld [vmem:[%s4 + $0x68] sm:$0xff]
        %v609 = vld [vmem:[%s4 + $0x70] sm:$0xff]
        %v610 = vld [vmem:[%s4 + $0x78] sm:$0xff]
        %v611 = vmul.f32 %v595, %v594
        %v612 = vmul.f32 %v596, %v594
        %v613 = vmul.f32 %v597, %v594
        %v614 = vmul.f32 %v598, %v594
        %v615 = vmul.f32 %v599, %v594
        %v616 = vmul.f32 %v600, %v594
        %v617 = vmul.f32 %v601, %v594
        %v618 = vmul.f32 %v602, %v594
        %v619 = vmul.f32 %v603, %v594
        %v620 = vmul.f32 %v604, %v594
        %v621 = vmul.f32 %v605, %v594
        %v622 = vmul.f32 %v606, %v594
        %v623 = vmul.f32 %v607, %v594
        %v624 = vmul.f32 %v608, %v594
        %v625 = vmul.f32 %v609, %v594
        %v626 = vmul.f32 %v610, %v594
        %v627 = vsel %vm556, %v611, 0.0
        %628 = vadd.xlane.f32.xlu0 %v627
        %v629 = vpop.xlane.xlu0 %628
        %v630 = vsel %vm556, %v612, 0.0
        %631 = vadd.xlane.f32.xlu0 %v630
        %v632 = vpop.xlane.xlu0 %631
        %v633 = vsel %vm556, %v613, 0.0
        %634 = vadd.xlane.f32.xlu0 %v633
        %v635 = vpop.xlane.xlu0 %634
        %v636 = vsel %vm556, %v614, 0.0
        %637 = vadd.xlane.f32.xlu0 %v636
        %v638 = vpop.xlane.xlu0 %637
        %v639 = vsel %vm556, %v615, 0.0
        %640 = vadd.xlane.f32.xlu0 %v639
        %v641 = vpop.xlane.xlu0 %640
        %v642 = vsel %vm556, %v616, 0.0
        %643 = vadd.xlane.f32.xlu0 %v642
        %v644 = vpop.xlane.xlu0 %643
        %v645 = vsel %vm556, %v617, 0.0
        %646 = vadd.xlane.f32.xlu0 %v645
        %v647 = vpop.xlane.xlu0 %646
        %v648 = vsel %vm556, %v618, 0.0
        %649 = vadd.xlane.f32.xlu0 %v648
        %v650 = vpop.xlane.xlu0 %649
        %v651 = vsel %vm556, %v619, 0.0
        %652 = vadd.xlane.f32.xlu0 %v651
        %v653 = vpop.xlane.xlu0 %652
        %v654 = vsel %vm556, %v620, 0.0
        %655 = vadd.xlane.f32.xlu0 %v654
        %v656 = vpop.xlane.xlu0 %655
        %v657 = vsel %vm556, %v621, 0.0
        %658 = vadd.xlane.f32.xlu0 %v657
        %v659 = vpop.xlane.xlu0 %658
        %v660 = vsel %vm556, %v622, 0.0
        %661 = vadd.xlane.f32.xlu0 %v660
        %v662 = vpop.xlane.xlu0 %661
        %v663 = vsel %vm556, %v623, 0.0
        %664 = vadd.xlane.f32.xlu0 %v663
        %v665 = vpop.xlane.xlu0 %664
        %v666 = vsel %vm556, %v624, 0.0
        %667 = vadd.xlane.f32.xlu0 %v666
        %v668 = vpop.xlane.xlu0 %667
        %v669 = vsel %vm556, %v625, 0.0
        %670 = vadd.xlane.f32.xlu0 %v669
        %v671 = vpop.xlane.xlu0 %670
        %v672 = vsel %vm556, %v626, 0.0
        %673 = vadd.xlane.f32.xlu0 %v672
        %v674 = vpop.xlane.xlu0 %673
        %v675 = vsub.f32 0.0, %v629
        %v676 = vsub.f32 0.0, %v632
        %v677 = vsub.f32 0.0, %v635
        %v678 = vsub.f32 0.0, %v638
        %v679 = vsub.f32 0.0, %v641
        %v680 = vsub.f32 0.0, %v644
        %v681 = vsub.f32 0.0, %v647
        %v682 = vsub.f32 0.0, %v650
        %v683 = vsub.f32 0.0, %v653
        %v684 = vsub.f32 0.0, %v656
        %v685 = vsub.f32 0.0, %v659
        %v686 = vsub.f32 0.0, %v662
        %v687 = vsub.f32 0.0, %v665
        %v688 = vsub.f32 0.0, %v668
        %v689 = vsub.f32 0.0, %v671
        %v690 = vsub.f32 0.0, %v674
        %v691 = vmul.f32 %v675, 1.442695
        %v692 = vpow.pop %v691
        %v693 = vmul.f32 %v676, 1.442695
        %v694 = vpow.pop %v693
        %v695 = vmul.f32 %v677, 1.442695
        %v696 = vpow.pop %v695
        %v697 = vmul.f32 %v678, 1.442695
        %v698 = vpow.pop %v697
        %v699 = vmul.f32 %v679, 1.442695
        %v700 = vpow.pop %v699
        %v701 = vmul.f32 %v680, 1.442695
        %v702 = vpow.pop %v701
        %v703 = vmul.f32 %v681, 1.442695
        %v704 = vpow.pop %v703
        %v705 = vmul.f32 %v682, 1.442695
        %v706 = vpow.pop %v705
        %v707 = vmul.f32 %v683, 1.442695
        %v708 = vpow.pop %v707
        %v709 = vmul.f32 %v684, 1.442695
        %v710 = vpow.pop %v709
        %v711 = vmul.f32 %v685, 1.442695
        %v712 = vpow.pop %v711
        %v713 = vmul.f32 %v686, 1.442695
        %v714 = vpow.pop %v713
        %v715 = vmul.f32 %v687, 1.442695
        %v716 = vpow.pop %v715
        %v717 = vmul.f32 %v688, 1.442695
        %v718 = vpow.pop %v717
        %v719 = vmul.f32 %v689, 1.442695
        %v720 = vpow.pop %v719
        %v721 = vmul.f32 %v690, 1.442695
        %v722 = vpow.pop %v721
        %v723 = vadd.f32 %v692, 1.0
        %v724 = vadd.f32 %v694, 1.0
        %v725 = vadd.f32 %v696, 1.0
        %v726 = vadd.f32 %v698, 1.0
        %v727 = vadd.f32 %v700, 1.0
        %v728 = vadd.f32 %v702, 1.0
        %v729 = vadd.f32 %v704, 1.0
        %v730 = vadd.f32 %v706, 1.0
        %v731 = vadd.f32 %v708, 1.0
        %v732 = vadd.f32 %v710, 1.0
        %v733 = vadd.f32 %v712, 1.0
        %v734 = vadd.f32 %v714, 1.0
        %v735 = vadd.f32 %v716, 1.0
        %v736 = vadd.f32 %v718, 1.0
        %v737 = vadd.f32 %v720, 1.0
        %v738 = vadd.f32 %v722, 1.0
        %v739 = vrcp.pop %v723
        %v740 = vmul.f32 1.0, %v739
        %v741 = vrcp.pop %v724
        %v742 = vmul.f32 1.0, %v741
        %v743 = vrcp.pop %v725
        %v744 = vmul.f32 1.0, %v743
        %v745 = vrcp.pop %v726
        %v746 = vmul.f32 1.0, %v745
        %v747 = vrcp.pop %v727
        %v748 = vmul.f32 1.0, %v747
        %v749 = vrcp.pop %v728
        %v750 = vmul.f32 1.0, %v749
        %v751 = vrcp.pop %v729
        %v752 = vmul.f32 1.0, %v751
        %v753 = vrcp.pop %v730
        %v754 = vmul.f32 1.0, %v753
        %v755 = vrcp.pop %v731
        %v756 = vmul.f32 1.0, %v755
        %v757 = vrcp.pop %v732
        %v758 = vmul.f32 1.0, %v757
        %v759 = vrcp.pop %v733
        %v760 = vmul.f32 1.0, %v759
        %v761 = vrcp.pop %v734
        %v762 = vmul.f32 1.0, %v761
        %v763 = vrcp.pop %v735
        %v764 = vmul.f32 1.0, %v763
        %v765 = vrcp.pop %v736
        %v766 = vmul.f32 1.0, %v765
        %v767 = vrcp.pop %v737
        %v768 = vmul.f32 1.0, %v767
        %v769 = vrcp.pop %v738
        %v770 = vmul.f32 1.0, %v769
        %v771 = vmul.f32 %v740, %v283
        %v772 = vmul.f32 %v740, %v284
        %v773 = vmul.f32 %v742, %v285
        %v774 = vmul.f32 %v742, %v286
        %v775 = vmul.f32 %v744, %v287
        %v776 = vmul.f32 %v744, %v288
        %v777 = vmul.f32 %v746, %v289
        %v778 = vmul.f32 %v746, %v290
        %v779 = vmul.f32 %v748, %v291
        %v780 = vmul.f32 %v748, %v292
        %v781 = vmul.f32 %v750, %v293
        %v782 = vmul.f32 %v750, %v294
        %v783 = vmul.f32 %v752, %v295
        %v784 = vmul.f32 %v752, %v296
        %v785 = vmul.f32 %v754, %v297
        %v786 = vmul.f32 %v754, %v298
        %v787 = vmul.f32 %v756, %v299
        %v788 = vmul.f32 %v756, %v300
        %v789 = vmul.f32 %v758, %v301
        %v790 = vmul.f32 %v758, %v302
        %v791 = vmul.f32 %v760, %v303
        %v792 = vmul.f32 %v760, %v304
        %v793 = vmul.f32 %v762, %v305
        %v794 = vmul.f32 %v762, %v306
        %v795 = vmul.f32 %v764, %v307
        %v796 = vmul.f32 %v764, %v308
        %v797 = vmul.f32 %v766, %v309
        %v798 = vmul.f32 %v766, %v310
        %v799 = vmul.f32 %v768, %v311
        %v800 = vmul.f32 %v768, %v312
        %v801 = vmul.f32 %v770, %v313
        %v802 = vmul.f32 %v770, %v314
        %v803 = vadd.f32 %v771, %v315
        %v804 = vadd.f32 %v772, %v316
        %v805 = vadd.f32 %v773, %v317
        %v806 = vadd.f32 %v774, %v318
        %v807 = vadd.f32 %v775, %v319
        %v808 = vadd.f32 %v776, %v320
        %v809 = vadd.f32 %v777, %v321
        %v810 = vadd.f32 %v778, %v322
        %v811 = vadd.f32 %v779, %v323
        %v812 = vadd.f32 %v780, %v324
        %v813 = vadd.f32 %v781, %v325
        %v814 = vadd.f32 %v782, %v326
        %v815 = vadd.f32 %v783, %v327
        %v816 = vadd.f32 %v784, %v328
        %v817 = vadd.f32 %v785, %v329
        %v818 = vadd.f32 %v786, %v330
        %v819 = vadd.f32 %v787, %v331
        %v820 = vadd.f32 %v788, %v332
        %v821 = vadd.f32 %v789, %v333
        %v822 = vadd.f32 %v790, %v334
        %v823 = vadd.f32 %v791, %v335
        %v824 = vadd.f32 %v792, %v336
        %v825 = vadd.f32 %v793, %v337
        %v826 = vadd.f32 %v794, %v338
        %v827 = vadd.f32 %v795, %v339
        %v828 = vadd.f32 %v796, %v340
        %v829 = vadd.f32 %v797, %v341
        %v830 = vadd.f32 %v798, %v342
        %v831 = vadd.f32 %v799, %v343
        %v832 = vadd.f32 %v800, %v344
        %v833 = vadd.f32 %v801, %v345
        %v834 = vadd.f32 %v802, %v346
        %835 = vst [vmem:[%s282] sm:$0xff] %v803
        %836 = vst [vmem:[%s282 + $0x8] sm:$0xff] %v804
        %837 = vst [vmem:[%s282 + $0x10] sm:$0xff] %v805
        %838 = vst [vmem:[%s282 + $0x18] sm:$0xff] %v806
        %839 = vst [vmem:[%s282 + $0x20] sm:$0xff] %v807
        %840 = vst [vmem:[%s282 + $0x28] sm:$0xff] %v808
        %841 = vst [vmem:[%s282 + $0x30] sm:$0xff] %v809
        %842 = vst [vmem:[%s282 + $0x38] sm:$0xff] %v810
        %843 = vst [vmem:[%s282 + $0x40] sm:$0xff] %v811
        %844 = vst [vmem:[%s282 + $0x48] sm:$0xff] %v812
        %845 = vst [vmem:[%s282 + $0x50] sm:$0xff] %v813
        %846 = vst [vmem:[%s282 + $0x58] sm:$0xff] %v814
        %847 = vst [vmem:[%s282 + $0x60] sm:$0xff] %v815
        %848 = vst [vmem:[%s282 + $0x68] sm:$0xff] %v816
        %849 = vst [vmem:[%s282 + $0x70] sm:$0xff] %v817
        %850 = vst [vmem:[%s282 + $0x78] sm:$0xff] %v818
        %851 = vst [vmem:[%s282 + $0x80] sm:$0xff] %v819
        %852 = vst [vmem:[%s282 + $0x88] sm:$0xff] %v820
        %853 = vst [vmem:[%s282 + $0x90] sm:$0xff] %v821
        %854 = vst [vmem:[%s282 + $0x98] sm:$0xff] %v822
        %855 = vst [vmem:[%s282 + $0xa0] sm:$0xff] %v823
        %856 = vst [vmem:[%s282 + $0xa8] sm:$0xff] %v824
        %857 = vst [vmem:[%s282 + $0xb0] sm:$0xff] %v825
        %858 = vst [vmem:[%s282 + $0xb8] sm:$0xff] %v826
        %859 = vst [vmem:[%s282 + $0xc0] sm:$0xff] %v827
        %860 = vst [vmem:[%s282 + $0xc8] sm:$0xff] %v828
        %861 = vst [vmem:[%s282 + $0xd0] sm:$0xff] %v829
        %862 = vst [vmem:[%s282 + $0xd8] sm:$0xff] %v830
        %863 = vst [vmem:[%s282 + $0xe0] sm:$0xff] %v831
        %864 = vst [vmem:[%s282 + $0xe8] sm:$0xff] %v832
        %865 = vst [vmem:[%s282 + $0xf0] sm:$0xff] %v833
        %866 = vst [vmem:[%s282 + $0xf8] sm:$0xff] %v834
        %s867 = sand.u32 %s148, 1
        %s868 = scalar_lea.sflag [#allocation4], %s867
        %s869 = sand.u32 %s148, 1
        %s870 = smul.addr %s869, 256
        %s871 = scalar_lea.vmem [#allocation7], %s870
        // Predicated region
        $region49: #{tpu_custom_call.1} parent=39 // pred_check
          %p872 = pneg %p158
        $region50: #{tpu_custom_call.1} parent=39 // pred_check_branch
          %874 = sbr.rel (%p872) target = $region52
        $region51: #{tpu_custom_call.1} parent=39 // pred_region
          %s876 = ssub.s32 4096, 4096
          %877 = vsyncadd %s868, %s876
          %s878 = smul.addr %s25, 32
          %s879 = smul.addr %s878, 128
          %s880 = scalar_lea.hbm %s5, %s879
          %s881 = sshll.u32 %s871, 4
          %s882 = int_to_ptr.vmem [resolvable:$true] %s881
          %887 = dma.vmem_to_hbm [thread:$0]  %s882, 4096, %s880, %s868, 256, 256, 16
        $region52: #{tpu_custom_call.1} parent=39 // pred_fallthru
          _
      $region40: #{tpu_custom_call.1} parent=5 // pred_fallthru
        _
      %p888 = scmp.le.s32.totalorder 2, %s20
      // Predicated region
      $region53: #{tpu_custom_call.1} parent=5 // pred_check
        %p889 = pneg %p888
      $region54: #{tpu_custom_call.1} parent=5 // pred_check_branch
        %891 = sbr.rel (%p889) target = $region56
      $region55: #{tpu_custom_call.1} parent=5 // pred_region
        %s892 = ssub.s32 %s20, 2
        // Predicated region
        $region57: #{tpu_custom_call.1} parent=55 // pred_check
          %p893 = pneg %p164
        $region58: #{tpu_custom_call.1} parent=55 // pred_check_branch
          %895 = sbr.rel (%p893) target = $region60
        $region59: #{tpu_custom_call.1} parent=55 // pred_region
          %s896 = sand.u32 %s149, 1
          %s897 = scalar_lea.sflag [#allocation4], %s896
          %s898 = sand.u32 %s149, 1
          %s899 = smul.addr %s898, 256
          %s900 = scalar_lea.vmem [#allocation7], %s899
          %901 = dma.done %s897, 4096
        $region60: #{tpu_custom_call.1} parent=55 // pred_fallthru
          _
      $region56: #{tpu_custom_call.1} parent=5 // pred_fallthru
        _
    $region6: #{tpu_custom_call.1} parent=1 // loop_footer
      %s24 = sadd.s32 1, %s20
    $region7: #{tpu_custom_call.1} parent=1 // loop_footer_branch
      %19 = sbr.rel target = $region3
    $region8: #{tpu_custom_call.1} parent=1 // loop_exit
      _
    %902 = vsyncpa [#allocation3], 1
    %s903 = scalar_lea.sflag [#allocation3], 1
    %904 = vsyncpa %s903, 1
    %905 = vsyncpa [#allocation6], 1
    %s906 = scalar_lea.sflag [#allocation6], 1
    %907 = vsyncpa %s906, 1
    %908 = vsyncpa [#allocation4], 1
    %s909 = scalar_lea.sflag [#allocation4], 1
    %910 = vsyncpa %s909, 1

</llo_original>
